<compile_context>
chip_gen: v7x
topology: tpu7x:2x2x1
jax: 0.10.0
libtpu: 0.0.40
codegen_flags: <defaults>
</compile_context>

<pallas_src>
import math

import jax
import jax.numpy as jnp
from jax.experimental import pallas as pl
from jax.experimental.pallas import tpu as pltpu


def _round_up(a, b):
    return (a + b - 1) // b * b


def _patch_proj_kernel(p_ref, w_ref, b_ref, o_ref):
    # p_ref: (TM, K) bf16 patch rows; w_ref: (K, Ep) bf16 (resident);
    # b_ref: (1, Ep) f32 (resident).  Accumulate + bias in f32, store out_dtype.
    acc = jnp.dot(p_ref[...], w_ref[...], preferred_element_type=jnp.float32)
    o_ref[...] = (acc + b_ref[...]).astype(o_ref.dtype)


def patch_embed_overlap(x, weight, bias, patch_size, stride_size, *,
                        tm=1024, out_dtype=jnp.bfloat16):
    """x: (B, C, H, W); weight: (E, C, ph, pw); bias: (E,).

    Returns (B, num_patches, E), matching
      Conv2d(C, E, kernel=patch, stride=stride)(x).flatten(2).transpose(1, 2)
    """
    B, C, H, W = x.shape
    E = weight.shape[0]
    ph, pw = patch_size
    sh, sw = stride_size
    num_y = (H - ph) // sh + 1
    num_x = (W - pw) // sw + 1
    N = num_y * num_x
    M = B * N
    K = ph * pw * C

    # --- im2col glue (plain JAX): bf16 first, strided slices, single concat --
    x_nhwc = jnp.transpose(x.astype(jnp.bfloat16), (0, 2, 3, 1))      # (B,H,W,C)
    slices = []
    for dy in range(ph):
        for dx in range(pw):
            slices.append(jax.lax.slice(
                x_nhwc,
                (0, dy, dx, 0),
                (B, dy + (num_y - 1) * sh + 1, dx + (num_x - 1) * sw + 1, C),
                (1, sh, sw, 1)))                                      # (B,ny,nx,C)
    # K ordered (ph, pw, C); no K/M zero-padding copies.
    patches = jnp.concatenate(slices, axis=-1).reshape(M, K)

    # weight (E, C, ph, pw) -> (ph, pw, C, E) -> (K, E); pad only E to lanes.
    Ep = _round_up(E, 128)
    w_mat = jnp.transpose(weight, (2, 3, 1, 0)).reshape(K, E).astype(jnp.bfloat16)
    w_p = jnp.pad(w_mat, ((0, 0), (0, Ep - E)))
    b_p = jnp.pad(bias.astype(jnp.float32), (0, Ep - E)).reshape(1, Ep)

    # --- tiling: big M tiles, but keep >= 2 blocks so both v7x TCs get work --
    tm = max(16, min(tm, _round_up(pl.cdiv(M, 2), 16)))   # bf16 sublane multiple
    n_blocks = pl.cdiv(M, tm)                              # trailing tile masked

    out_bytes = jnp.dtype(out_dtype).itemsize
    vmem_needed = (2 * tm * K * 2            # patch tiles (bf16, double-buffered)
                   + 2 * K * Ep * 2          # weight (fetched once, 2 bufs alloc'd)
                   + 2 * tm * Ep * out_bytes  # output tiles (double-buffered)
                   + 2 * Ep * 4)             # bias
    try:
        vmem_cap = pltpu.get_tpu_info().vmem_capacity_bytes
    except Exception:  # fallback: assume the smallest (v7x, 64 MiB) part
        vmem_cap = 64 * 1024 * 1024
    vmem_limit = int(min(vmem_cap * 3 // 4,
                         max(32 * 1024 * 1024, int(vmem_needed * 1.5))))

    cost = pl.CostEstimate(
        flops=2 * M * K * Ep,
        transcendentals=0,
        bytes_accessed=M * K * 2 + K * Ep * 2 + M * Ep * out_bytes + Ep * 4,
    )

    out = pl.pallas_call(
        _patch_proj_kernel,
        out_shape=jax.ShapeDtypeStruct((M, Ep), out_dtype),
        grid_spec=pltpu.PrefetchScalarGridSpec(
            num_scalar_prefetch=0,
            grid=(n_blocks,),
            in_specs=[
                pl.BlockSpec((tm, K), lambda i: (i, 0)),   # patch rows: pipelined
                pl.BlockSpec((K, Ep), lambda i: (0, 0)),   # weight: resident
                pl.BlockSpec((1, Ep), lambda i: (0, 0)),   # bias: resident
            ],
            out_specs=pl.BlockSpec((tm, Ep), lambda i: (i, 0)),
        ),
        compiler_params=pltpu.CompilerParams(
            dimension_semantics=("parallel",),
            vmem_limit_bytes=vmem_limit,
        ),
        cost_estimate=cost,
    )(patches, w_p, b_p)

    return out[:, :E].reshape(B, N, E)


def reference_patch_embed(x, weight, bias, patch_size, stride_size):
    """Pure-JAX reference: conv2d (VALID, NCHW/OIHW) + flatten + transpose."""
    y = jax.lax.conv_general_dilated(
        x, weight,
        window_strides=stride_size,
        padding="VALID",
        dimension_numbers=("NCHW", "OIHW", "NCHW"),
    ) + bias[None, :, None, None]
    B, E, Hy, Wx = y.shape
    return y.reshape(B, E, Hy * Wx).transpose(0, 2, 1)


if __name__ == "__main__":
    # Small, overlap-producing configuration (stride < patch):
    B, C, H, W = 2, 4, 16, 16
    patch_size = (4, 4)
    stride_size = (3, 3)
    embed_dim = 32

    key = jax.random.PRNGKey(0)
    kx, kw = jax.random.split(key)

    x = jax.random.normal(kx, (B, C, H, W), dtype=jnp.float32)

    # Deterministic init mirroring _init_weights: weight ~ N(0, sqrt(2/n)),
    # n = kh * kw * out_channels.  Conv bias left at zero (synthetic init).
    n = patch_size[0] * patch_size[1] * embed_dim
    weight = jax.random.normal(
        kw, (embed_dim, C, patch_size[0], patch_size[1]), dtype=jnp.float32
    ) * math.sqrt(2.0 / n)
    bias = jnp.zeros((embed_dim,), dtype=jnp.float32)

    out = patch_embed_overlap(x, weight, bias, patch_size, stride_size)
    out = jax.block_until_ready(out)

    ref = reference_patch_embed(x, weight, bias, patch_size, stride_size)
    assert out.shape == ref.shape, (out.shape, ref.shape)
    # bf16 operands + bf16 output with f32 accumulation -> loosened tolerance.
    out_f32 = out.astype(jnp.float32)
    assert jnp.allclose(out_f32, ref, atol=4e-2, rtol=4e-2), float(
        jnp.max(jnp.abs(out_f32 - ref))
    )

    print("KERNEL_OK")
</pallas_src>

<mosaic_0001>
module attributes {stable_mosaic.version = 11 : i64} {
  func.func @_patch_proj_kernel(%arg0: i32, %arg1: memref<32x64xbf16, #tpu.memory_space<vmem>>, %arg2: memref<64x128xbf16, #tpu.memory_space<vmem>>, %arg3: memref<1x128xf32, #tpu.memory_space<vmem>>, %arg4: memref<32x128xbf16, #tpu.memory_space<vmem>>) attributes {dimension_semantics = [#tpu.dimension_semantics<parallel>], iteration_bounds = array<i64: 2>, scalar_prefetch = 0 : i64, scratch_operands = 0 : i64, tpu.core_type = #tpu.core_type<tc>, window_params = [{transform_indices = @transform_0, window_bounds = array<i64: 32, 64>}, {pipeline_mode = #tpu.pipeline_mode<synchronous>, transform_indices = @transform_1, window_bounds = array<i64: 64, 128>}, {pipeline_mode = #tpu.pipeline_mode<synchronous>, transform_indices = @transform_2, window_bounds = array<i64: 1, 128>}, {transform_indices = @transform_3, window_bounds = array<i64: 32, 128>}]} {
    %c0 = arith.constant 0 : index
    %c0_0 = arith.constant 0 : index
    %0 = vector.load %arg1[%c0, %c0_0] : memref<32x64xbf16, #tpu.memory_space<vmem>>, vector<32x64xbf16>
    %c0_1 = arith.constant 0 : index
    %c0_2 = arith.constant 0 : index
    %1 = vector.load %arg2[%c0_1, %c0_2] : memref<64x128xbf16, #tpu.memory_space<vmem>>, vector<64x128xbf16>
    %cst = arith.constant dense<0.000000e+00> : vector<32x128xf32>
    %2 = tpu.matmul %0, %1, %cst {dimension_numbers = #tpu.dot_dimension_numbers<[1], [0], [0], [1], [0, 0, 1, 1], [], []>} : vector<32x64xbf16>, vector<64x128xbf16>, vector<32x128xf32> -> vector<32x128xf32>
    %c0_3 = arith.constant 0 : index
    %c0_4 = arith.constant 0 : index
    %3 = vector.load %arg3[%c0_3, %c0_4] : memref<1x128xf32, #tpu.memory_space<vmem>>, vector<1x128xf32>
    %4 = vector.broadcast %3 : vector<1x128xf32> to vector<32x128xf32>
    %5 = arith.addf %2, %4 : vector<32x128xf32>
    %6 = arith.truncf %5 : vector<32x128xf32> to vector<32x128xbf16>
    %c0_5 = arith.constant 0 : index
    %c0_6 = arith.constant 0 : index
    %7 = vector.load %arg4[%c0_5, %c0_6] : memref<32x128xbf16, #tpu.memory_space<vmem>>, vector<32x128xbf16>
    tpu.vector_store %arg4[%c0_5, %c0_6], %6 {strides = array<i32>} : memref<32x128xbf16, #tpu.memory_space<vmem>>, vector<32x128xbf16>,
    return
  }
  func.func @transform_0(%arg0: i32) -> (i32, i32) {
    %c0_i32 = arith.constant 0 : i32
    %c0_i32_0 = arith.constant 0 : i32
    return %arg0, %c0_i32 : i32, i32
  }
  func.func @transform_1(%arg0: i32) -> (i32, i32) {
    %c0_i32 = arith.constant 0 : i32
    %c0_i32_0 = arith.constant 0 : i32
    %c0_i32_1 = arith.constant 0 : i32
    return %c0_i32, %c0_i32_0 : i32, i32
  }
  func.func @transform_2(%arg0: i32) -> (i32, i32) {
    %c0_i32 = arith.constant 0 : i32
    %c0_i32_0 = arith.constant 0 : i32
    %c0_i32_1 = arith.constant 0 : i32
    return %c0_i32, %c0_i32_0 : i32, i32
  }
  func.func @transform_3(%arg0: i32) -> (i32, i32) {
    %c0_i32 = arith.constant 0 : i32
    %c0_i32_0 = arith.constant 0 : i32
    return %arg0, %c0_i32 : i32, i32
  }
}

</mosaic_0001>

<llo_original>
// kernel: tpu_custom_call.1
$region0: #{tpu_custom_call.1}
  #allocation0 [shape = 'u32[]', space=smem, size = 0x4, offset = 0x4, fixed_abs, tag = 'smem constant byte address 0x4 - core index']
  #allocation1 [shape = 'u32[144,128]{1,0:T(1,128)}', space=vmem, size = 0x12000, scoped, tag = 'internal scratch']
  %s0 = inlined_call_operand.hbm [shape: bf16[50,64], index: 0, kind: input, shape index: {}]
  %s1 = inlined_call_operand.hbm [shape: bf16[64,128], index: 1, kind: input, shape index: {}]
  %s2 = inlined_call_operand.vmem [shape: f32[1,128], index: 2, kind: input, shape index: {}]
  %s3 = inlined_call_operand.hbm [shape: bf16[50,128], index: 3, kind: output, shape index: {}]
  %s4 = sld [smem:[#allocation0]]
  $region53: #{tpu_custom_call.1} parent=0
    _
  %s6 = ssub.s32 1, %s4
  %s7 = scalar_select 0, %s6, %s4
  $region1: #{tpu_custom_call.1} parent=0
    #allocation2 [shape = 'u8[16384]{0}', space=vmem, size = 0x4000, scoped, tag = 'input window, operand 0']
    #allocation3 [shape = 's32[2]{0}', space=sflag, size = 0x8, scoped, tag = 'scoped memory for tpu_custom_call.1']
    #allocation4 [shape = 's32[2]{0}', space=sflag, size = 0x8, scoped, tag = 'scoped memory for tpu_custom_call.1']
    #allocation5 [shape = 'u8[16384]{0}', space=vmem, size = 0x4000, scoped, tag = 'input window, operand 1, single buffered']
    #allocation6 [shape = 's32[1]{0}', space=sflag, size = 0x4, scoped, tag = 'scoped memory for tpu_custom_call.1']
    #allocation7 [shape = 'u8[16384]{0}', space=vmem, size = 0x4000, scoped, tag = 'output window, operand 0']
    %8 = vsyncpa [#allocation3], 0
    %s9 = scalar_lea.sflag [#allocation3], 1
    %10 = vsyncpa %s9, 0
    %11 = vsyncpa [#allocation6], 0
    %12 = vsyncpa [#allocation4], 0
    %s13 = scalar_lea.sflag [#allocation4], 1
    %14 = vsyncpa %s13, 0
    loop: start=0, step=1, limit=4
    $region2: #{tpu_custom_call.1} parent=1 // loop_pre_header
      _
    $region3: #{tpu_custom_call.1} parent=1 // loop_header
      %s16 = sphi 0, %s20
      %p17 = scmp.ge.s32.totalorder %s16, 4
      %s26 = sphi 0, %s28
      %s29 = sphi 0, %s26
      %s30 = sphi 0, %s29
      %s46 = sphi 0, %s30
      %s50 = sphi 0, %s50
      %s52 = sphi 0, %s50
      %s53 = sphi 0, %s52
      %s67 = sphi 0, %s53
      %s71 = sphi 0, %s71
      %s73 = sphi 0, %s71
      %s74 = sphi 0, %s73
      %s88 = sphi 0, %s74
      %s94 = sphi 0, %s96
      %s97 = sphi 0, %s94
      %s98 = sphi 0, %s97
      %s114 = sphi 0, %s98
    $region4: #{tpu_custom_call.1} parent=1 // loop_header_branch
      %19 = sbr.rel (%p17) target = $region8
    $region5: #{tpu_custom_call.1} parent=1 // loop_body
      %s21 = ssub.s32 %s16, 1
      %s22 = ssub.s32 %s16, 2
      %s23 = sadd.s32 %s16, 1
      %s24 = ssub.s32 %s16, %s23
      %p25 = scmp.eq.s32.totalorder %s24, 0
      %s27 = sadd.s32 %s26, 1
      %s28 = scalar_select %p25, %s26, %s27
      %p31 = pneg %p25
      %p32 = scmp.eq.s32.totalorder %s16, 1
      %p33 = por %p31, %p32
      %p34 = scmp.ne.s32.totalorder %s26, %s29
      %p35 = scmp.eq.s32.totalorder %s16, 0
      %p36 = por %p34, %p35
      %p37 = scmp.ne.s32.totalorder %s26, %s29
      %p38 = scmp.eq.s32.totalorder %s21, 1
      %p39 = por %p37, %p38
      %p40 = scmp.ne.s32.totalorder %s29, %s30
      %p41 = scmp.eq.s32.totalorder %s21, 0
      %p42 = por %p40, %p41
      %p43 = scmp.ne.s32.totalorder %s29, %s30
      %p44 = scmp.eq.s32.totalorder %s22, 1
      %p45 = por %p43, %p44
      %p47 = scmp.ne.s32.totalorder %s30, %s46
      %p48 = scmp.eq.s32.totalorder %s22, 0
      %p49 = por %p47, %p48
      %s51 = sadd.s32 %s50, 1
      %p54 = scmp.eq.s32.totalorder %s16, 1
      %p55 = scmp.ne.s32.totalorder %s50, %s52
      %p56 = scmp.eq.s32.totalorder %s16, 0
      %p57 = por %p55, %p56
      %p58 = scmp.ne.s32.totalorder %s50, %s52
      %p59 = scmp.eq.s32.totalorder %s21, 1
      %p60 = por %p58, %p59
      %p61 = scmp.ne.s32.totalorder %s52, %s53
      %p62 = scmp.eq.s32.totalorder %s21, 0
      %p63 = por %p61, %p62
      %p64 = scmp.ne.s32.totalorder %s52, %s53
      %p65 = scmp.eq.s32.totalorder %s22, 1
      %p66 = por %p64, %p65
      %p68 = scmp.ne.s32.totalorder %s53, %s67
      %p69 = scmp.eq.s32.totalorder %s22, 0
      %p70 = por %p68, %p69
      %s72 = sadd.s32 %s71, 1
      %p75 = scmp.eq.s32.totalorder %s16, 1
      %p76 = scmp.ne.s32.totalorder %s71, %s73
      %p77 = scmp.eq.s32.totalorder %s16, 0
      %p78 = por %p76, %p77
      %p79 = scmp.ne.s32.totalorder %s71, %s73
      %p80 = scmp.eq.s32.totalorder %s21, 1
      %p81 = por %p79, %p80
      %p82 = scmp.ne.s32.totalorder %s73, %s74
      %p83 = scmp.eq.s32.totalorder %s21, 0
      %p84 = por %p82, %p83
      %p85 = scmp.ne.s32.totalorder %s73, %s74
      %p86 = scmp.eq.s32.totalorder %s22, 1
      %p87 = por %p85, %p86
      %p89 = scmp.ne.s32.totalorder %s74, %s88
      %p90 = scmp.eq.s32.totalorder %s22, 0
      %p91 = por %p89, %p90
      %s92 = ssub.s32 %s16, %s23
      %p93 = scmp.eq.s32.totalorder %s92, 0
      %s95 = sadd.s32 %s94, 1
      %s96 = scalar_select %p93, %s94, %s95
      %p99 = pneg %p93
      %p100 = scmp.eq.s32.totalorder %s16, 1
      %p101 = por %p99, %p100
      %p102 = scmp.ne.s32.totalorder %s94, %s97
      %p103 = scmp.eq.s32.totalorder %s16, 0
      %p104 = por %p102, %p103
      %p105 = scmp.ne.s32.totalorder %s94, %s97
      %p106 = scmp.eq.s32.totalorder %s21, 1
      %p107 = por %p105, %p106
      %p108 = scmp.ne.s32.totalorder %s97, %s98
      %p109 = scmp.eq.s32.totalorder %s21, 0
      %p110 = por %p108, %p109
      %p111 = scmp.ne.s32.totalorder %s97, %s98
      %p112 = scmp.eq.s32.totalorder %s22, 1
      %p113 = por %p111, %p112
      %p115 = scmp.ne.s32.totalorder %s98, %s114
      %p116 = scmp.eq.s32.totalorder %s22, 0
      %p117 = por %p115, %p116
      %p118 = scmp.le.s32.totalorder 1, %s16
      %p119 = scmp.lt.s32.totalorder %s16, 3
      %p120 = pnand %p118, %p119
      %p121 = pneg %p120
      // Predicated region
      $region9: #{tpu_custom_call.1} parent=5 // pred_check
        _
      $region10: #{tpu_custom_call.1} parent=5 // pred_check_branch
        %123 = sbr.rel (%p120) target = $region12
      $region11: #{tpu_custom_call.1} parent=5 // pred_region
        %s124 = ssub.s32 %s16, 1
        // Predicated region
        $region13: #{tpu_custom_call.1} parent=11 // pred_check
          %p125 = pneg %p63
        $region14: #{tpu_custom_call.1} parent=11 // pred_check_branch
          %127 = sbr.rel (%p125) target = $region16
        $region15: #{tpu_custom_call.1} parent=11 // pred_region
          %s129 = ssub.s32 512, 512
          %130 = vsyncadd [#allocation6], %s129
          %s131 = sshll.u32 [#allocation5], 4
          %s132 = int_to_ptr.vmem [resolvable:$true] %s131
          %137 = dma.hbm_to_vmem [thread:$0]  %s1, 512, %s132, [#allocation6], 64, 64, 4
        $region16: #{tpu_custom_call.1} parent=11 // pred_fallthru
          _
        // Predicated region
        $region17: #{tpu_custom_call.1} parent=11 // pred_check
          %p138 = pneg %p84
        $region18: #{tpu_custom_call.1} parent=11 // pred_check_branch
          %140 = sbr.rel (%p138) target = $region20
        $region19: #{tpu_custom_call.1} parent=11 // pred_region
          _
        $region20: #{tpu_custom_call.1} parent=11 // pred_fallthru
          _
      $region12: #{tpu_custom_call.1} parent=5 // pred_fallthru
        _
      %p141 = scmp.lt.s32.totalorder %s16, 2
      // Predicated region
      $region21: #{tpu_custom_call.1} parent=5 // pred_check
        %p142 = pneg %p141
      $region22: #{tpu_custom_call.1} parent=5 // pred_check_branch
        %144 = sbr.rel (%p142) target = $region24
      $region23: #{tpu_custom_call.1} parent=5 // pred_region
        // Predicated region
        $region25: #{tpu_custom_call.1} parent=23 // pred_check
          %p145 = pneg %p36
        $region26: #{tpu_custom_call.1} parent=23 // pred_check_branch
          %147 = sbr.rel (%p145) target = $region28
        $region27: #{tpu_custom_call.1} parent=23 // pred_region
          %s148 = sand.u32 %s26, 1
          %s149 = scalar_lea.sflag [#allocation3], %s148
          %s150 = sand.u32 %s26, 1
          %s151 = smul.addr %s150, 16
          %s152 = scalar_lea.vmem [#allocation2], %s151
          %s153 = smul.u32 4, %s16
          %s154 = ssub.s32 7, %s153
          %p155 = scmp.lt.s32.totalorder %s154, 4
          %s156 = scalar_select %p155, %s154, 4
          %s157 = smul.u32 64, %s156
          %s159 = ssub.s32 256, %s157
          %160 = vsyncadd %s149, %s159
          %p161 = scmp.ne.s32.totalorder 0, %s157
          %s162 = smul.addr %s153, 64
          %s163 = scalar_lea.hbm %s0, %s162
          %s164 = smul.u32 4, %s156
          %s165 = sshll.u32 %s152, 4
          %s166 = int_to_ptr.vmem [resolvable:$true] %s165
          %s167 = sshll.u32 %s164, 4
          %171 = dma.hbm_to_vmem [thread:$0]  (%p161), %s163, %s167, %s166, %s149, 64, 64, 4
        $region28: #{tpu_custom_call.1} parent=23 // pred_fallthru
          _
      $region24: #{tpu_custom_call.1} parent=5 // pred_fallthru
        _
      %p172 = scmp.le.s32.totalorder 1, %s16
      %p173 = scmp.lt.s32.totalorder %s16, 3
      %p174 = pnand %p172, %p173
      %p175 = pneg %p174
      // Predicated region
      $region29: #{tpu_custom_call.1} parent=5 // pred_check
        _
      $region30: #{tpu_custom_call.1} parent=5 // pred_check_branch
        %177 = sbr.rel (%p174) target = $region32
      $region31: #{tpu_custom_call.1} parent=5 // pred_region
        %s178 = ssub.s32 %s16, 1
        %s179 = sand.u32 %s29, 1
        %s180 = scalar_lea.sflag [#allocation3], %s179
        %s181 = sand.u32 %s29, 1
        %s182 = smul.addr %s181, 16
        %s183 = scalar_lea.vmem [#allocation2], %s182
        // Predicated region
        $region33: #{tpu_custom_call.1} parent=31 // pred_check
          %p184 = pneg %p42
        $region34: #{tpu_custom_call.1} parent=31 // pred_check_branch
          %186 = sbr.rel (%p184) target = $region36
        $region35: #{tpu_custom_call.1} parent=31 // pred_region
          %187 = dma.done %s180, 256
        $region36: #{tpu_custom_call.1} parent=31 // pred_fallthru
          _
        // Predicated region
        $region37: #{tpu_custom_call.1} parent=31 // pred_check
          %p188 = pneg %p63
        $region38: #{tpu_custom_call.1} parent=31 // pred_check_branch
          %190 = sbr.rel (%p188) target = $region40
        $region39: #{tpu_custom_call.1} parent=31 // pred_region
          %191 = dma.done [#allocation6], 512
        $region40: #{tpu_custom_call.1} parent=31 // pred_fallthru
          _
        %s192 = sand.u32 %s29, 1
        %s193 = scalar_lea.sflag [#allocation3], %s192
        %s194 = sand.u32 %s29, 1
        %s195 = smul.addr %s194, 16
        %s196 = scalar_lea.vmem [#allocation2], %s195
        %p197 = pneg %p42
        %p198 = pneg %p39
        %p199 = pneg %p63
        %p200 = pneg %p60
        %p201 = pneg %p84
        %p202 = pneg %p81
        %p203 = pneg %p110
        %p204 = pneg %p107
        %s205 = sand.u32 %s97, 1
        %s206 = scalar_lea.sflag [#allocation4], %s205
        %s207 = sand.u32 %s97, 1
        %s208 = smul.addr %s207, 16
        %s209 = scalar_lea.vmem [#allocation7], %s208
        %s210 = smul.u32 4, %s21
        %s211 = ssub.s32 7, %s210
        %p212 = scmp.lt.s32.totalorder %s211, 4
        %s213 = scalar_select %p212, %s211, 4
        %s214 = smul.u32 64, %s213
        %s215 = smul.u32 4, %s21
        %s216 = ssub.s32 7, %s215
        %p217 = scmp.lt.s32.totalorder %s216, 4
        %s218 = scalar_select %p217, %s216, 4
        %s219 = smul.u32 64, %s218
        %v221 = vld [vmem:[%s183] sm:$0xf]
        %v222 = vld [vmem:[%s183 + $0x4] sm:$0xf]
        %v223 = vld [vmem:[%s183 + $0x8] sm:$0xf]
        %v224 = vld [vmem:[%s183 + $0xc] sm:$0xf]
        %v225 = vld [vmem:[#allocation5] sm:$0xf]
        %v226 = vld [vmem:[#allocation5 + $0x4] sm:$0xf]
        %v227 = vld [vmem:[#allocation5 + $0x8] sm:$0xf]
        %v228 = vld [vmem:[#allocation5 + $0xc] sm:$0xf]
        %v229 = vld [vmem:[#allocation5 + $0x10] sm:$0xf]
        %v230 = vld [vmem:[#allocation5 + $0x14] sm:$0xf]
        %v231 = vld [vmem:[#allocation5 + $0x18] sm:$0xf]
        %v232 = vld [vmem:[#allocation5 + $0x1c] sm:$0xf]
        %v233 = vld [vmem:[%s2] sm:$0x1]
        %v235 = vlaneseq
        %v236 = vshrl.u32 %v235, 7
        %v237 = vsub.s32 0, %v236
        %v238 = vrot.slane %v233, %v237
        %v244 = vunpack.c.l.b16 %v221
        %v245 = vunpack.c.l.b16 %v222
        %v246 = vunpack.c.l.b16 %v223
        %v247 = vunpack.c.l.b16 %v224
        %v248 = vpack.c.b16 %v245, %v244
        %v249 = vpack.c.b16 %v247, %v246
        %v258 = vunpack.c.l.b16 %v225
        %v259 = vunpack.c.l.b16 %v226
        %v260 = vunpack.c.l.b16 %v227
        %v261 = vunpack.c.l.b16 %v228
        %v262 = vunpack.c.l.b16 %v229
        %v263 = vunpack.c.l.b16 %v230
        %v264 = vunpack.c.l.b16 %v231
        %v265 = vunpack.c.l.b16 %v232
        %v266 = vpack.c.b16 %v259, %v258
        %v267 = vpack.c.b16 %v261, %v260
        %v268 = vpack.c.b16 %v263, %v262
        %v269 = vpack.c.b16 %v265, %v264
        %vm274 = vcmask 523264
        %v276 = vsel %vm274, %v248, 0
        %v279 = vsel %vm274, %v249, 0
        %281 = vmatprep.subr.bf16.mxu0 0
        %282 = vmatpush1.bf16.msra.mxu0 %v266
        %283 = vmatprep.subr.bf16.mxu0 0
        %284 = vmatpush1.bf16.msra.mxu0 %v267
        %285 = vmatprep.subr.bf16.mxu0 0
        %286 = vmatpush1.bf16.msra.mxu0 %v268
        %287 = vmatprep.subr.bf16.mxu0 0
        %288 = vmatpush1.bf16.msra.mxu0 %v269
        %289 = vmatprep.subr.bf16.mxu0 0
        %290 = vmatpush1.bf16.msra.mxu0 0
        %291 = vmatprep.subr.bf16.mxu0 0
        %292 = vmatpush1.bf16.msra.mxu0 0
        %293 = vmatprep.subr.bf16.mxu0 0
        %294 = vmatpush1.bf16.msra.mxu0 0
        %295 = vmatprep.subr.bf16.mxu0 0
        %296 = vmatpush1.bf16.msra.mxu0 0
        %297 = vmatprep.subr.bf16.mxu0 0
        %298 = vmatpush1.bf16.msra.mxu0 0
        %299 = vmatprep.subr.bf16.mxu0 0
        %300 = vmatpush1.bf16.msra.mxu0 0
        %301 = vmatprep.subr.bf16.mxu0 0
        %302 = vmatpush1.bf16.msra.mxu0 0
        %303 = vmatprep.subr.bf16.mxu0 0
        %304 = vmatpush1.bf16.msra.mxu0 0
        %305 = vmatprep.subr.bf16.mxu0 0
        %306 = vmatpush1.bf16.msra.mxu0 0
        %307 = vmatprep.subr.bf16.mxu0 0
        %308 = vmatpush1.bf16.msra.mxu0 0
        %309 = vmatprep.subr.bf16.mxu0 0
        %310 = vmatpush1.bf16.msra.mxu0 0
        %311 = vmatprep.subr.bf16.mxu0 0
        %312 = vmatpush1.bf16.msra.mxu0 0
        %313 = vmatprep.mubr.bf16.mxu0 0
        %314 = vmatmul.mubr.bf16.gmra.mrb[0].mxu0 %v276
        %v315 = vpop.f32.mrb[0].mxu0
        %v316 = vadd.f32 %v238, %v315
        %v317 = vpop.f32.mrb[0].mxu0
        %v318 = vpop.f32.mrb[0].mxu0
        %v319 = vadd.f32 %v238, %v318
        %v320 = vpop.f32.mrb[0].mxu0
        %321 = vmatprep.mubr.bf16.mxu0 0
        %322 = vmatmul.mubr.bf16.gmra.mrb[0].mxu0 %v279
        %v323 = vpop.f32.mrb[0].mxu0
        %v324 = vadd.f32 %v238, %v323
        %v325 = vpop.f32.mrb[0].mxu0
        %v326 = vpop.f32.mrb[0].mxu0
        %v327 = vadd.f32 %v238, %v326
        %v328 = vpop.f32.mrb[0].mxu0
        %329 = vdwg.mxu0
        %v330 = vpack.c.bf16 %v319, %v316
        %v331 = vpack.c.bf16 %v327, %v324
        %v334 = vunpack.c.l.b16 %v330
        %v335 = vunpack.c.h.b16 %v330
        %v336 = vunpack.c.l.b16 %v331
        %v337 = vunpack.c.h.b16 %v331
        %v338 = vpack.c.b16 %v334, %v334
        %v339 = vpack.c.b16 %v335, %v335
        %v340 = vpack.c.b16 %v336, %v336
        %v341 = vpack.c.b16 %v337, %v337
        %346 = vst [vmem:[%s209] sm:$0xf] %v338
        %347 = vst [vmem:[%s209 + $0x4] sm:$0xf] %v339
        %348 = vst [vmem:[%s209 + $0x8] sm:$0xf] %v340
        %349 = vst [vmem:[%s209 + $0xc] sm:$0xf] %v341
        %s350 = sand.u32 %s97, 1
        %s351 = scalar_lea.sflag [#allocation4], %s350
        %s352 = sand.u32 %s97, 1
        %s353 = smul.addr %s352, 16
        %s354 = scalar_lea.vmem [#allocation7], %s353
        // Predicated region
        $region41: #{tpu_custom_call.1} parent=31 // pred_check
          %p355 = pneg %p107
        $region42: #{tpu_custom_call.1} parent=31 // pred_check_branch
          %357 = sbr.rel (%p355) target = $region44
        $region43: #{tpu_custom_call.1} parent=31 // pred_region
          %s358 = smul.u32 4, %s21
          %s359 = ssub.s32 7, %s358
          %p360 = scmp.lt.s32.totalorder %s359, 4
          %s361 = scalar_select %p360, %s359, 4
          %s362 = smul.u32 64, %s361
          %s364 = ssub.s32 256, %s362
          %365 = vsyncadd %s351, %s364
          %p366 = scmp.ne.s32.totalorder 0, %s362
          %s367 = smul.addr %s358, 64
          %s368 = scalar_lea.hbm %s3, %s367
          %s369 = smul.u32 4, %s361
          %s370 = sshll.u32 %s354, 4
          %s371 = int_to_ptr.vmem [resolvable:$true] %s370
          %s372 = sshll.u32 %s369, 4
          %376 = dma.vmem_to_hbm [thread:$0]  (%p366), %s371, %s372, %s368, %s351, 64, 64, 4
        $region44: #{tpu_custom_call.1} parent=31 // pred_fallthru
          _
      $region32: #{tpu_custom_call.1} parent=5 // pred_fallthru
        _
      %p377 = scmp.le.s32.totalorder 2, %s16
      // Predicated region
      $region45: #{tpu_custom_call.1} parent=5 // pred_check
        %p378 = pneg %p377
      $region46: #{tpu_custom_call.1} parent=5 // pred_check_branch
        %380 = sbr.rel (%p378) target = $region48
      $region47: #{tpu_custom_call.1} parent=5 // pred_region
        %s381 = ssub.s32 %s16, 2
        // Predicated region
        $region49: #{tpu_custom_call.1} parent=47 // pred_check
          %p382 = pneg %p113
        $region50: #{tpu_custom_call.1} parent=47 // pred_check_branch
          %384 = sbr.rel (%p382) target = $region52
        $region51: #{tpu_custom_call.1} parent=47 // pred_region
          %s385 = sand.u32 %s98, 1
          %s386 = scalar_lea.sflag [#allocation4], %s385
          %s387 = sand.u32 %s98, 1
          %s388 = smul.addr %s387, 16
          %s389 = scalar_lea.vmem [#allocation7], %s388
          %390 = dma.done %s386, 256
        $region52: #{tpu_custom_call.1} parent=47 // pred_fallthru
          _
      $region48: #{tpu_custom_call.1} parent=5 // pred_fallthru
        _
    $region6: #{tpu_custom_call.1} parent=1 // loop_footer
      %s20 = sadd.s32 1, %s16
    $region7: #{tpu_custom_call.1} parent=1 // loop_footer_branch
      %15 = sbr.rel target = $region3
    $region8: #{tpu_custom_call.1} parent=1 // loop_exit
      _
    %391 = vsyncpa [#allocation3], 1
    %s392 = scalar_lea.sflag [#allocation3], 1
    %393 = vsyncpa %s392, 1
    %394 = vsyncpa [#allocation6], 1
    %395 = vsyncpa [#allocation4], 1
    %s396 = scalar_lea.sflag [#allocation4], 1
    %397 = vsyncpa %s396, 1

</llo_original>
